<compile_context>
chip_gen: v6e
topology: v6e:2x2x1
jax: 0.10.0
libtpu: 0.0.40
codegen_flags: <defaults>
</compile_context>

<pallas_src>
import jax
import jax.numpy as jnp
import numpy as np
from jax.experimental import pallas as pl
from jax.experimental.pallas import tpu as pltpu


def _simple_transform_kernel(coeff_ref, x_ref, o_ref):
    """coeff_ref: (4,128) [c_self, c_prev, c_next, bias]; x/o: (block_rows,128).

    Lanes hold interleaved points [x0, y0, x1, y1, ...] (64 points per row).
    """
    v = x_ref[...]
    c_self = coeff_ref[0:1, :]   # L00 on even lanes, L11 on odd lanes
    c_prev = coeff_ref[1:2, :]   # L01 on odd lanes, 0 on even lanes
    c_next = coeff_ref[2:3, :]   # L10 on even lanes, 0 on odd lanes
    bias = coeff_ref[3:4, :]     # [L20, L21, L20, L21, ...] (generally nonzero)
    # np.roll semantics: roll(v, 1)[j] = v[j-1]; roll(v, 127)[j] = v[j+1 mod 128].
    # Wrap-around lanes are killed by the zeroed coefficient parities.
    v_prev = pltpu.roll(v, 1, axis=1)     # odd lane 2i+1 now holds x_i
    v_next = pltpu.roll(v, 127, axis=1)   # even lane 2i now holds y_i
    o_ref[...] = v * c_self + v_prev * c_prev + v_next * c_next + bias


def _round_up(a, b):
    return ((a + b - 1) // b) * b


def simple_transform(x, linear, *, max_block_rows=4096, min_pallas_points=8192):
    """x: (N, 2) float32, linear: (3, 3) float32 -> (N, 2) float32."""
    x = jnp.asarray(x, jnp.float32)
    linear = jnp.asarray(linear, jnp.float32)
    n = x.shape[0]

    if n < min_pallas_points:
        # Small batch: pallas_call fixed overhead dwarfs the 6-FLOP affine.
        padded = jnp.concatenate([x, jnp.ones((n, 1), jnp.float32)], axis=1)
        return (padded @ linear)[:, :2]

    # ---- lane-dense view: 64 interleaved (x, y) points per 128-lane row ----
    flat = x.reshape(-1)                 # free for contiguous row-major float32
    total = 2 * n
    rem = (-total) % 128                 # <= 127 tail elems; 0 when N % 64 == 0
    if rem:
        flat = jnp.concatenate([flat, jnp.zeros((rem,), jnp.float32)])
    rows = (total + rem) // 128
    x2d = flat.reshape(rows, 128)

    # Tile: big enough to amortize per-step cost (4096 rows = 2 MiB/operand,
    # ~8 MiB VMEM double-buffered in+out), but capped at cdiv(rows, 2) so the
    # grid has >= 2 steps and both v7x TensorCores get work.  The last block
    # may be partial; Pallas masks it.
    block_rows = min(max_block_rows, _round_up(pl.cdiv(rows, 2), 8))
    grid_n = pl.cdiv(rows, block_rows)

    # ---- lane-parity-masked coefficient vectors (tiny, resident in VMEM) ----
    a00, a01 = linear[0, 0], linear[0, 1]
    a10, a11 = linear[1, 0], linear[1, 1]
    b0, b1 = linear[2, 0], linear[2, 1]
    zero = jnp.zeros((), jnp.float32)

    def pair(even_v, odd_v):
        return jnp.tile(jnp.stack([even_v, odd_v]), 64)       # (128,)

    coeff = jnp.stack([
        pair(a00, a11),    # self term
        pair(zero, a01),   # multiplies roll(v, +1)   (x_i -> odd output lane)
        pair(a10, zero),   # multiplies roll(v, +127) (y_i -> even output lane)
        pair(b0, b1),      # translation row of `linear`
    ])                     # (4, 128)

    out2d = pl.pallas_call(
        _simple_transform_kernel,
        out_shape=jax.ShapeDtypeStruct((rows, 128), jnp.float32),
        grid=(grid_n,),
        in_specs=[
            pl.BlockSpec((4, 128), lambda i: (0, 0)),            # coeffs (const)
            pl.BlockSpec((block_rows, 128), lambda i: (i, 0)),   # x tile
        ],
        out_specs=pl.BlockSpec((block_rows, 128), lambda i: (i, 0)),
        compiler_params=pltpu.CompilerParams(
            dimension_semantics=("parallel",),
            vmem_limit_bytes=32 * 1024 * 1024),
        cost_estimate=pl.CostEstimate(
            flops=7 * rows * 128,
            transcendentals=0,
            bytes_accessed=2 * rows * 128 * 4 + 4 * 128 * 4),
    )(coeff, x2d)

    out_flat = out2d.reshape(-1)
    if rem:
        out_flat = out_flat[:total]      # drop bias-only padded tail lanes
    return out_flat.reshape(n, 2)


def build_linear_param(key):
    """Deterministic replica of SimpleTransform.__init__ (no checkpoint load)."""
    sample = 2.0 * jax.random.normal(key, (3, 2), dtype=jnp.float32)  # Normal(0, 2)
    lin = jnp.pad(sample, ((0, 0), (0, 1)), mode="constant", constant_values=0.0)
    lin = lin.at[2, 2].set(1.0)
    return lin  # (3, 3)


def _reference(x, linear):
    xn = np.asarray(x, np.float64)
    ln = np.asarray(linear, np.float64)
    padded = np.concatenate([xn, np.ones((xn.shape[0], 1), np.float64)], axis=1)
    return (padded @ ln)[:, :2]


if __name__ == "__main__":
    key = jax.random.PRNGKey(0)
    k_lin, k1, k2, k3 = jax.random.split(key, 4)

    linear = build_linear_param(k_lin)                          # (3, 3)

    # Pallas path, block-aligned N (no wrapper pad, 2 grid steps).
    n = 4096
    x = jax.random.normal(k1, (n, 2), dtype=jnp.float32)
    out = jax.block_until_ready(simple_transform(x, linear, min_pallas_points=0))
    assert out.shape == (n, 2) and out.dtype == jnp.float32
    np.testing.assert_allclose(np.asarray(out), _reference(x, linear),
                               rtol=1e-5, atol=1e-5)

    # Pallas path, ragged N: <=127-element tail pad + partial last grid block.
    n2 = 5000
    x2 = jax.random.normal(k2, (n2, 2), dtype=jnp.float32)
    out2 = jax.block_until_ready(simple_transform(x2, linear, min_pallas_points=0))
    assert out2.shape == (n2, 2)
    np.testing.assert_allclose(np.asarray(out2), _reference(x2, linear),
                               rtol=1e-5, atol=1e-5)

    # Default small-batch fallback path (pure XLA, below min_pallas_points).
    x3 = jax.random.normal(k3, (100, 2), dtype=jnp.float32)
    out3 = jax.block_until_ready(simple_transform(x3, linear))
    np.testing.assert_allclose(np.asarray(out3), _reference(x3, linear),
                               rtol=1e-5, atol=1e-5)

    print("KERNEL_OK")
</pallas_src>

<mosaic_0001>
module attributes {stable_mosaic.version = 11 : i64} {
  func.func @_simple_transform_kernel(%arg0: i32, %arg1: memref<4x128xf32, #tpu.memory_space<vmem>>, %arg2: memref<32x128xf32, #tpu.memory_space<vmem>>, %arg3: memref<32x128xf32, #tpu.memory_space<vmem>>) attributes {dimension_semantics = [#tpu.dimension_semantics<parallel>], iteration_bounds = array<i64: 2>, scalar_prefetch = 0 : i64, scratch_operands = 0 : i64, tpu.core_type = #tpu.core_type<tc>, window_params = [{pipeline_mode = #tpu.pipeline_mode<synchronous>, transform_indices = @transform_0, window_bounds = array<i64: 4, 128>}, {transform_indices = @transform_1, window_bounds = array<i64: 32, 128>}, {transform_indices = @transform_2, window_bounds = array<i64: 32, 128>}]} {
    %c0 = arith.constant 0 : index
    %c0_0 = arith.constant 0 : index
    %0 = vector.load %arg2[%c0, %c0_0] : memref<32x128xf32, #tpu.memory_space<vmem>>, vector<32x128xf32>
    %c0_1 = arith.constant 0 : index
    %c0_2 = arith.constant 0 : index
    %1 = vector.load %arg1[%c0_1, %c0_2] : memref<4x128xf32, #tpu.memory_space<vmem>>, vector<1x128xf32>
    %c1 = arith.constant 1 : index
    %c0_3 = arith.constant 0 : index
    %2 = vector.load %arg1[%c1, %c0_3] : memref<4x128xf32, #tpu.memory_space<vmem>>, vector<1x128xf32>
    %c2 = arith.constant 2 : index
    %c0_4 = arith.constant 0 : index
    %3 = vector.load %arg1[%c2, %c0_4] : memref<4x128xf32, #tpu.memory_space<vmem>>, vector<1x128xf32>
    %c3 = arith.constant 3 : index
    %c0_5 = arith.constant 0 : index
    %4 = vector.load %arg1[%c3, %c0_5] : memref<4x128xf32, #tpu.memory_space<vmem>>, vector<1x128xf32>
    %c1_i32 = arith.constant 1 : i32
    %5 = tpu.dynamic_rotate %0 by %c1_i32 dim 1 : vector<32x128xf32>, i32 -> vector<32x128xf32>
    %c127_i32 = arith.constant 127 : i32
    %6 = tpu.dynamic_rotate %0 by %c127_i32 dim 1 : vector<32x128xf32>, i32 -> vector<32x128xf32>
    %7 = vector.broadcast %1 : vector<1x128xf32> to vector<32x128xf32>
    %8 = arith.mulf %0, %7 : vector<32x128xf32>
    %9 = vector.broadcast %2 : vector<1x128xf32> to vector<32x128xf32>
    %10 = arith.mulf %5, %9 : vector<32x128xf32>
    %11 = arith.addf %8, %10 : vector<32x128xf32>
    %12 = vector.broadcast %3 : vector<1x128xf32> to vector<32x128xf32>
    %13 = arith.mulf %6, %12 : vector<32x128xf32>
    %14 = arith.addf %11, %13 : vector<32x128xf32>
    %15 = vector.broadcast %4 : vector<1x128xf32> to vector<32x128xf32>
    %16 = arith.addf %14, %15 : vector<32x128xf32>
    %c0_6 = arith.constant 0 : index
    %c0_7 = arith.constant 0 : index
    %17 = vector.load %arg3[%c0_6, %c0_7] : memref<32x128xf32, #tpu.memory_space<vmem>>, vector<32x128xf32>
    tpu.vector_store %arg3[%c0_6, %c0_7], %16 {strides = array<i32>} : memref<32x128xf32, #tpu.memory_space<vmem>>, vector<32x128xf32>,
    return
  }
  func.func @transform_0(%arg0: i32) -> (i32, i32) {
    %c0_i32 = arith.constant 0 : i32
    %c0_i32_0 = arith.constant 0 : i32
    %c0_i32_1 = arith.constant 0 : i32
    return %c0_i32, %c0_i32_0 : i32, i32
  }
  func.func @transform_1(%arg0: i32) -> (i32, i32) {
    %c0_i32 = arith.constant 0 : i32
    %c0_i32_0 = arith.constant 0 : i32
    return %arg0, %c0_i32 : i32, i32
  }
  func.func @transform_2(%arg0: i32) -> (i32, i32) {
    %c0_i32 = arith.constant 0 : i32
    %c0_i32_0 = arith.constant 0 : i32
    return %arg0, %c0_i32 : i32, i32
  }
}

</mosaic_0001>

<llo_original>
// kernel: tpu_custom_call.1
$region0: #{tpu_custom_call.1}
  #allocation0 [shape = 'u32[]', space=smem, size = 0x4, offset = 0x4, fixed_abs, tag = 'smem constant byte address 0x4 - core index']
  #allocation1 [shape = 'u32[144,128]{1,0:T(1,128)}', space=vmem, size = 0x12000, scoped, tag = 'internal scratch']
  %s0 = inlined_call_operand.hbm [shape: f32[4,128], index: 0, kind: input, shape index: {}]
  %s1 = inlined_call_operand.hbm [shape: f32[64,128], index: 1, kind: input, shape index: {}]
  %s2 = inlined_call_operand.hbm [shape: f32[64,128], index: 2, kind: output, shape index: {}]
  %s3 = sld [smem:[#allocation0]]
  $region49: #{tpu_custom_call.1} parent=0
    _
  %s5 = ssub.s32 1, %s3
  %s6 = scalar_select 0, %s5, %s3
  $region1: #{tpu_custom_call.1} parent=0
    #allocation2 [shape = 'u8[2048]{0}', space=vmem, size = 0x800, scoped, tag = 'input window, operand 0, single buffered']
    #allocation3 [shape = 's32[2]{0}', space=sflag, size = 0x8, scoped, tag = 'scoped memory for tpu_custom_call.1']
    #allocation4 [shape = 's32[2]{0}', space=sflag, size = 0x8, scoped, tag = 'scoped memory for tpu_custom_call.1']
    #allocation5 [shape = 'u8[32768]{0}', space=vmem, size = 0x8000, scoped, tag = 'input window, operand 1']
    #allocation6 [shape = 's32[2]{0}', space=sflag, size = 0x8, scoped, tag = 'scoped memory for tpu_custom_call.1']
    #allocation7 [shape = 'u8[32768]{0}', space=vmem, size = 0x8000, scoped, tag = 'output window, operand 0']
    %7 = vsyncpa [#allocation3], 0
    %8 = vsyncpa [#allocation6], 0
    %s9 = scalar_lea.sflag [#allocation6], 1
    %10 = vsyncpa %s9, 0
    %11 = vsyncpa [#allocation4], 0
    %s12 = scalar_lea.sflag [#allocation4], 1
    %13 = vsyncpa %s12, 0
    loop: start=0, step=1, limit=4
    $region2: #{tpu_custom_call.1} parent=1 // loop_pre_header
      _
    $region3: #{tpu_custom_call.1} parent=1 // loop_header
      %s15 = sphi 0, %s19
      %p16 = scmp.ge.s32.totalorder %s15, 4
      %s23 = sphi 0, %s23
      %s25 = sphi 0, %s23
      %s26 = sphi 0, %s25
      %s40 = sphi 0, %s26
      %s46 = sphi 0, %s48
      %s49 = sphi 0, %s46
      %s50 = sphi 0, %s49
      %s66 = sphi 0, %s50
      %s72 = sphi 0, %s74
      %s75 = sphi 0, %s72
      %s76 = sphi 0, %s75
      %s92 = sphi 0, %s76
    $region4: #{tpu_custom_call.1} parent=1 // loop_header_branch
      %18 = sbr.rel (%p16) target = $region8
    $region5: #{tpu_custom_call.1} parent=1 // loop_body
      %s20 = ssub.s32 %s15, 1
      %s21 = ssub.s32 %s15, 2
      %s22 = sadd.s32 %s15, 1
      %s24 = sadd.s32 %s23, 1
      %p27 = scmp.eq.s32.totalorder %s15, 1
      %p28 = scmp.ne.s32.totalorder %s23, %s25
      %p29 = scmp.eq.s32.totalorder %s15, 0
      %p30 = por %p28, %p29
      %p31 = scmp.ne.s32.totalorder %s23, %s25
      %p32 = scmp.eq.s32.totalorder %s20, 1
      %p33 = por %p31, %p32
      %p34 = scmp.ne.s32.totalorder %s25, %s26
      %p35 = scmp.eq.s32.totalorder %s20, 0
      %p36 = por %p34, %p35
      %p37 = scmp.ne.s32.totalorder %s25, %s26
      %p38 = scmp.eq.s32.totalorder %s21, 1
      %p39 = por %p37, %p38
      %p41 = scmp.ne.s32.totalorder %s26, %s40
      %p42 = scmp.eq.s32.totalorder %s21, 0
      %p43 = por %p41, %p42
      %s44 = ssub.s32 %s15, %s22
      %p45 = scmp.eq.s32.totalorder %s44, 0
      %s47 = sadd.s32 %s46, 1
      %s48 = scalar_select %p45, %s46, %s47
      %p51 = pneg %p45
      %p52 = scmp.eq.s32.totalorder %s15, 1
      %p53 = por %p51, %p52
      %p54 = scmp.ne.s32.totalorder %s46, %s49
      %p55 = scmp.eq.s32.totalorder %s15, 0
      %p56 = por %p54, %p55
      %p57 = scmp.ne.s32.totalorder %s46, %s49
      %p58 = scmp.eq.s32.totalorder %s20, 1
      %p59 = por %p57, %p58
      %p60 = scmp.ne.s32.totalorder %s49, %s50
      %p61 = scmp.eq.s32.totalorder %s20, 0
      %p62 = por %p60, %p61
      %p63 = scmp.ne.s32.totalorder %s49, %s50
      %p64 = scmp.eq.s32.totalorder %s21, 1
      %p65 = por %p63, %p64
      %p67 = scmp.ne.s32.totalorder %s50, %s66
      %p68 = scmp.eq.s32.totalorder %s21, 0
      %p69 = por %p67, %p68
      %s70 = ssub.s32 %s15, %s22
      %p71 = scmp.eq.s32.totalorder %s70, 0
      %s73 = sadd.s32 %s72, 1
      %s74 = scalar_select %p71, %s72, %s73
      %p77 = pneg %p71
      %p78 = scmp.eq.s32.totalorder %s15, 1
      %p79 = por %p77, %p78
      %p80 = scmp.ne.s32.totalorder %s72, %s75
      %p81 = scmp.eq.s32.totalorder %s15, 0
      %p82 = por %p80, %p81
      %p83 = scmp.ne.s32.totalorder %s72, %s75
      %p84 = scmp.eq.s32.totalorder %s20, 1
      %p85 = por %p83, %p84
      %p86 = scmp.ne.s32.totalorder %s75, %s76
      %p87 = scmp.eq.s32.totalorder %s20, 0
      %p88 = por %p86, %p87
      %p89 = scmp.ne.s32.totalorder %s75, %s76
      %p90 = scmp.eq.s32.totalorder %s21, 1
      %p91 = por %p89, %p90
      %p93 = scmp.ne.s32.totalorder %s76, %s92
      %p94 = scmp.eq.s32.totalorder %s21, 0
      %p95 = por %p93, %p94
      %p96 = scmp.le.s32.totalorder 1, %s15
      %p97 = scmp.lt.s32.totalorder %s15, 3
      %p98 = pnand %p96, %p97
      %p99 = pneg %p98
      // Predicated region
      $region9: #{tpu_custom_call.1} parent=5 // pred_check
        _
      $region10: #{tpu_custom_call.1} parent=5 // pred_check_branch
        %101 = sbr.rel (%p98) target = $region12
      $region11: #{tpu_custom_call.1} parent=5 // pred_region
        %s102 = ssub.s32 %s15, 1
        // Predicated region
        $region13: #{tpu_custom_call.1} parent=11 // pred_check
          %p103 = pneg %p36
        $region14: #{tpu_custom_call.1} parent=11 // pred_check_branch
          %105 = sbr.rel (%p103) target = $region16
        $region15: #{tpu_custom_call.1} parent=11 // pred_region
          %s107 = ssub.s32 64, 64
          %108 = vsyncadd [#allocation3], %s107
          %s110 = sshll.u32 [#allocation2], 4
          %s111 = int_to_ptr.vmem [resolvable:$true] %s110
          %113 = dma.hbm_to_vmem [thread:$0]  %s0, 64, %s111, [#allocation3]
        $region16: #{tpu_custom_call.1} parent=11 // pred_fallthru
          _
      $region12: #{tpu_custom_call.1} parent=5 // pred_fallthru
        _
      %p114 = scmp.lt.s32.totalorder %s15, 2
      // Predicated region
      $region17: #{tpu_custom_call.1} parent=5 // pred_check
        %p115 = pneg %p114
      $region18: #{tpu_custom_call.1} parent=5 // pred_check_branch
        %117 = sbr.rel (%p115) target = $region20
      $region19: #{tpu_custom_call.1} parent=5 // pred_region
        // Predicated region
        $region21: #{tpu_custom_call.1} parent=19 // pred_check
          %p118 = pneg %p56
        $region22: #{tpu_custom_call.1} parent=19 // pred_check_branch
          %120 = sbr.rel (%p118) target = $region24
        $region23: #{tpu_custom_call.1} parent=19 // pred_region
          %s121 = sand.u32 %s46, 1
          %s122 = scalar_lea.sflag [#allocation6], %s121
          %s123 = sand.u32 %s46, 1
          %s124 = smul.addr %s123, 32
          %s125 = scalar_lea.vmem [#allocation5], %s124
          %s126 = smul.u32 4, %s15
          %s128 = ssub.s32 512, 512
          %129 = vsyncadd %s122, %s128
          %s130 = smul.addr %s126, 128
          %s131 = scalar_lea.hbm %s1, %s130
          %s132 = sshll.u32 %s125, 4
          %s133 = int_to_ptr.vmem [resolvable:$true] %s132
          %138 = dma.hbm_to_vmem [thread:$0]  %s131, 512, %s133, %s122, 128, 128, 8
        $region24: #{tpu_custom_call.1} parent=19 // pred_fallthru
          _
      $region20: #{tpu_custom_call.1} parent=5 // pred_fallthru
        _
      %p139 = scmp.le.s32.totalorder 1, %s15
      %p140 = scmp.lt.s32.totalorder %s15, 3
      %p141 = pnand %p139, %p140
      %p142 = pneg %p141
      // Predicated region
      $region25: #{tpu_custom_call.1} parent=5 // pred_check
        _
      $region26: #{tpu_custom_call.1} parent=5 // pred_check_branch
        %144 = sbr.rel (%p141) target = $region28
      $region27: #{tpu_custom_call.1} parent=5 // pred_region
        %s145 = ssub.s32 %s15, 1
        // Predicated region
        $region29: #{tpu_custom_call.1} parent=27 // pred_check
          %p146 = pneg %p36
        $region30: #{tpu_custom_call.1} parent=27 // pred_check_branch
          %148 = sbr.rel (%p146) target = $region32
        $region31: #{tpu_custom_call.1} parent=27 // pred_region
          %149 = dma.done [#allocation3], 64
        $region32: #{tpu_custom_call.1} parent=27 // pred_fallthru
          _
        %s150 = sand.u32 %s49, 1
        %s151 = scalar_lea.sflag [#allocation6], %s150
        %s152 = sand.u32 %s49, 1
        %s153 = smul.addr %s152, 32
        %s154 = scalar_lea.vmem [#allocation5], %s153
        // Predicated region
        $region33: #{tpu_custom_call.1} parent=27 // pred_check
          %p155 = pneg %p62
        $region34: #{tpu_custom_call.1} parent=27 // pred_check_branch
          %157 = sbr.rel (%p155) target = $region36
        $region35: #{tpu_custom_call.1} parent=27 // pred_region
          %158 = dma.done %s151, 512
        $region36: #{tpu_custom_call.1} parent=27 // pred_fallthru
          _
        %p159 = pneg %p36
        %p160 = pneg %p33
        %s161 = sand.u32 %s49, 1
        %s162 = scalar_lea.sflag [#allocation6], %s161
        %s163 = sand.u32 %s49, 1
        %s164 = smul.addr %s163, 32
        %s165 = scalar_lea.vmem [#allocation5], %s164
        %p166 = pneg %p62
        %p167 = pneg %p59
        %p168 = pneg %p88
        %p169 = pneg %p85
        %s170 = sand.u32 %s75, 1
        %s171 = scalar_lea.sflag [#allocation4], %s170
        %s172 = sand.u32 %s75, 1
        %s173 = smul.addr %s172, 32
        %s174 = scalar_lea.vmem [#allocation7], %s173
        %s175 = smul.u32 4, %s20
        %s176 = smul.u32 4, %s20
        %v177 = vld [vmem:[%s154] sm:$0xff]
        %v178 = vld [vmem:[%s154 + $0x8] sm:$0xff]
        %v179 = vld [vmem:[%s154 + $0x10] sm:$0xff]
        %v180 = vld [vmem:[%s154 + $0x18] sm:$0xff]
        %v181 = vld [vmem:[#allocation2] sm:$0x1]
        %v182 = vld [vmem:[#allocation2 + $0x1] sm:$0x1]
        %v183 = vld [vmem:[#allocation2 + $0x2] sm:$0x1]
        %v184 = vld [vmem:[#allocation2 + $0x3] sm:$0x1]
        %185 = vrot.lane.b32.xlu0 %v177, 1
        %v186 = vpop.permute.xlu0 %185
        %187 = vrot.lane.b32.xlu0 %v178, 1
        %v188 = vpop.permute.xlu0 %187
        %189 = vrot.lane.b32.xlu0 %v179, 1
        %v190 = vpop.permute.xlu0 %189
        %191 = vrot.lane.b32.xlu0 %v180, 1
        %v192 = vpop.permute.xlu0 %191
        %193 = vrot.lane.b32.xlu0 %v177, 127
        %v194 = vpop.permute.xlu0 %193
        %195 = vrot.lane.b32.xlu0 %v178, 127
        %v196 = vpop.permute.xlu0 %195
        %197 = vrot.lane.b32.xlu0 %v179, 127
        %v198 = vpop.permute.xlu0 %197
        %199 = vrot.lane.b32.xlu0 %v180, 127
        %v200 = vpop.permute.xlu0 %199
        %v201 = vlaneseq
        %v202 = vshrl.u32 %v201, 7
        %v203 = vsub.s32 0, %v202
        %v204 = vrot.slane %v181, %v203
        %v205 = vmul.f32 %v177, %v204
        %v206 = vmul.f32 %v178, %v204
        %v207 = vmul.f32 %v179, %v204
        %v208 = vmul.f32 %v180, %v204
        %v209 = vlaneseq
        %v210 = vshrl.u32 %v209, 7
        %v211 = vsub.s32 0, %v210
        %v212 = vrot.slane %v182, %v211
        %v213 = vmul.f32 %v186, %v212
        %v214 = vmul.f32 %v188, %v212
        %v215 = vmul.f32 %v190, %v212
        %v216 = vmul.f32 %v192, %v212
        %v217 = vadd.f32 %v205, %v213
        %v218 = vadd.f32 %v206, %v214
        %v219 = vadd.f32 %v207, %v215
        %v220 = vadd.f32 %v208, %v216
        %v221 = vlaneseq
        %v222 = vshrl.u32 %v221, 7
        %v223 = vsub.s32 0, %v222
        %v224 = vrot.slane %v183, %v223
        %v225 = vmul.f32 %v194, %v224
        %v226 = vmul.f32 %v196, %v224
        %v227 = vmul.f32 %v198, %v224
        %v228 = vmul.f32 %v200, %v224
        %v229 = vadd.f32 %v217, %v225
        %v230 = vadd.f32 %v218, %v226
        %v231 = vadd.f32 %v219, %v227
        %v232 = vadd.f32 %v220, %v228
        %v233 = vlaneseq
        %v234 = vshrl.u32 %v233, 7
        %v235 = vsub.s32 0, %v234
        %v236 = vrot.slane %v184, %v235
        %v237 = vadd.f32 %v229, %v236
        %v238 = vadd.f32 %v230, %v236
        %v239 = vadd.f32 %v231, %v236
        %v240 = vadd.f32 %v232, %v236
        %241 = vst [vmem:[%s174] sm:$0xff] %v237
        %242 = vst [vmem:[%s174 + $0x8] sm:$0xff] %v238
        %243 = vst [vmem:[%s174 + $0x10] sm:$0xff] %v239
        %244 = vst [vmem:[%s174 + $0x18] sm:$0xff] %v240
        %s245 = sand.u32 %s75, 1
        %s246 = scalar_lea.sflag [#allocation4], %s245
        %s247 = sand.u32 %s75, 1
        %s248 = smul.addr %s247, 32
        %s249 = scalar_lea.vmem [#allocation7], %s248
        // Predicated region
        $region37: #{tpu_custom_call.1} parent=27 // pred_check
          %p250 = pneg %p85
        $region38: #{tpu_custom_call.1} parent=27 // pred_check_branch
          %252 = sbr.rel (%p250) target = $region40
        $region39: #{tpu_custom_call.1} parent=27 // pred_region
          %s253 = smul.u32 4, %s20
          %s255 = ssub.s32 512, 512
          %256 = vsyncadd %s246, %s255
          %s257 = smul.addr %s253, 128
          %s258 = scalar_lea.hbm %s2, %s257
          %s259 = sshll.u32 %s249, 4
          %s260 = int_to_ptr.vmem [resolvable:$true] %s259
          %265 = dma.vmem_to_hbm [thread:$0]  %s260, 512, %s258, %s246, 128, 128, 8
        $region40: #{tpu_custom_call.1} parent=27 // pred_fallthru
          _
      $region28: #{tpu_custom_call.1} parent=5 // pred_fallthru
        _
      %p266 = scmp.le.s32.totalorder 2, %s15
      // Predicated region
      $region41: #{tpu_custom_call.1} parent=5 // pred_check
        %p267 = pneg %p266
      $region42: #{tpu_custom_call.1} parent=5 // pred_check_branch
        %269 = sbr.rel (%p267) target = $region44
      $region43: #{tpu_custom_call.1} parent=5 // pred_region
        %s270 = ssub.s32 %s15, 2
        // Predicated region
        $region45: #{tpu_custom_call.1} parent=43 // pred_check
          %p271 = pneg %p91
        $region46: #{tpu_custom_call.1} parent=43 // pred_check_branch
          %273 = sbr.rel (%p271) target = $region48
        $region47: #{tpu_custom_call.1} parent=43 // pred_region
          %s274 = sand.u32 %s76, 1
          %s275 = scalar_lea.sflag [#allocation4], %s274
          %s276 = sand.u32 %s76, 1
          %s277 = smul.addr %s276, 32
          %s278 = scalar_lea.vmem [#allocation7], %s277
          %279 = dma.done %s275, 512
        $region48: #{tpu_custom_call.1} parent=43 // pred_fallthru
          _
      $region44: #{tpu_custom_call.1} parent=5 // pred_fallthru
        _
    $region6: #{tpu_custom_call.1} parent=1 // loop_footer
      %s19 = sadd.s32 1, %s15
    $region7: #{tpu_custom_call.1} parent=1 // loop_footer_branch
      %14 = sbr.rel target = $region3
    $region8: #{tpu_custom_call.1} parent=1 // loop_exit
      _
    %280 = vsyncpa [#allocation3], 1
    %s281 = scalar_lea.sflag [#allocation3], 1
    %282 = vsyncpa %s281, 1
    %283 = vsyncpa [#allocation6], 1
    %s284 = scalar_lea.sflag [#allocation6], 1
    %285 = vsyncpa %s284, 1
    %286 = vsyncpa [#allocation4], 1
    %s287 = scalar_lea.sflag [#allocation4], 1
    %288 = vsyncpa %s287, 1

</llo_original>
